<compile_context>
chip_gen: v5e
topology: v5e:2x2
jax: 0.10.0
libtpu: 0.0.40
codegen_flags: <defaults>
</compile_context>

<pallas_src>
import functools

import jax
import jax.numpy as jnp
from jax.experimental import pallas as pl
from jax.experimental.pallas import tpu as pltpu


def seq_inception_kernel(x_ref, w_ref, b_ref, o_ref):
    """One (batch, L-tile) grid step.

    x_ref : (1, K, TL)    bf16 im2col'd input, K = 5*Cin (tap-major, chan-minor)
    w_ref : (Cout, K)     bf16 effective weights (conv_pool folded in)
    b_ref : (Cout, 1)     f32  effective bias
    o_ref : (1, Cout, TL) f32
    """
    o_ref[0] = (jnp.dot(w_ref[...], x_ref[0],
                        preferred_element_type=jnp.float32)
                + b_ref[...])


def _fold_params(params):
    """Fold the 1x1 conv_pool into the branch weights (everything is linear):
         W_eff[t] = w5[t]@wp5 + (w3[t-1]@wp3 if 1<=t<=3) + (w1@wp1 if t==2)
         b_eff    = b1@wp1 + b3@wp3 + b5@wp5 + bp
    then flatten taps (K = 5*Cin) and transpose to (Cout, K) for the NCL-oriented
    matmul.  Fold is done in f32/HIGHEST; the final cast to bf16 feeds the MXU.
    """
    w1, b1, w3, b3, w5, b5, wp, bp = params
    in_nc, out_nc = w1.shape
    ein = functools.partial(jnp.einsum, precision=jax.lax.Precision.HIGHEST)

    wp1 = wp[0:out_nc]
    wp3 = wp[out_nc:2 * out_nc]
    wp5 = wp[2 * out_nc:3 * out_nc]

    w_eff = ein("tio,op->tip", w5, wp5)                    # (5, Cin, Cout)
    w_eff = w_eff.at[1:4].add(ein("tio,op->tip", w3, wp3))
    w_eff = w_eff.at[2].add(ein("io,op->ip", w1, wp1))
    b_eff = (ein("o,op->p", b1, wp1) + ein("o,op->p", b3, wp3)
             + ein("o,op->p", b5, wp5) + bp)               # (Cout,)

    w_t = jnp.transpose(w_eff.reshape(5 * in_nc, out_nc),  # (Cout, 5*Cin)
                        (1, 0)).astype(jnp.bfloat16)
    b_col = b_eff.reshape(out_nc, 1).astype(jnp.float32)   # (Cout, 1)
    return w_t, b_col


def _choose_l_tile(L):
    # Full extent for short sequences (also satisfies the last-dim==full-dim
    # BlockSpec rule when L is not a multiple of 128); cap at 512 lanes so the
    # double-buffered f32 output tile stays small even on v7x's 64 MiB VMEM
    # while keeping lane-dense (>=128) unmasked stores for realistic L.
    return L if L <= 512 else 512


@jax.jit
def seq_inception_block(x_ncl, params):
    """x_ncl: (B, in_nc, L) float32, PyTorch NCL convention.
    Returns (B, out_nc, L) float32.  The whole wrapper is jitted so the pad /
    im2col prologue fuses with surrounding XLA ops; there is no epilogue."""
    B, in_nc, L = x_ncl.shape
    out_nc = params[0].shape[1]
    K = 5 * in_nc

    w_t, b_col = _fold_params(params)

    # im2col over the pad-2 sequence: xim[b, t*Cin + c, l] = x_pad[b, c, l + t].
    # Input traffic is tiny relative to the f32 output, so the 5x duplication is
    # cheap and removes any halo handling from the kernel.
    x_pad = jnp.pad(x_ncl, ((0, 0), (0, 0), (2, 2)))
    xim = jnp.concatenate([x_pad[:, :, t:t + L] for t in range(5)],
                          axis=1).astype(jnp.bfloat16)      # (B, K, L)

    TL = _choose_l_tile(L)
    num_l = pl.cdiv(L, TL)

    cost = pl.CostEstimate(
        flops=2 * B * out_nc * L * K,
        transcendentals=0,
        bytes_accessed=(B * K * L * 2            # bf16 im2col input
                        + out_nc * K * 2         # bf16 weights
                        + out_nc * 4             # f32 bias
                        + B * out_nc * L * 4))   # f32 output

    out = pl.pallas_call(
        seq_inception_kernel,
        out_shape=jax.ShapeDtypeStruct((B, out_nc, L), jnp.float32),
        grid_spec=pltpu.PrefetchScalarGridSpec(
            num_scalar_prefetch=0,
            grid=(B, num_l),
            in_specs=[
                pl.BlockSpec((1, K, TL), lambda b, l: (b, 0, l)),
                pl.BlockSpec((out_nc, K), lambda b, l: (0, 0)),
                pl.BlockSpec((out_nc, 1), lambda b, l: (0, 0)),
            ],
            out_specs=pl.BlockSpec((1, out_nc, TL), lambda b, l: (b, 0, l)),
        ),
        compiler_params=pltpu.CompilerParams(
            dimension_semantics=("parallel", "parallel")),
        cost_estimate=cost,
    )(xim, w_t, b_col)
    return out


def init_params(key, in_nc, out_nc):
    """Deterministic init mimicking nn.Conv1d default (kaiming-uniform bounds).
    Weights stored transposed / tap-major:
      conv_k weight (out, in, k) -> (k, in, out); conv_pool (out, 3*out, 1) -> (3*out, out)."""
    ks = jax.random.split(key, 8)

    def u(k, shape, fan_in):
        bound = 1.0 / jnp.sqrt(fan_in)
        return jax.random.uniform(k, shape, jnp.float32, -bound, bound)

    w1 = u(ks[0], (in_nc, out_nc), in_nc * 1)
    b1 = u(ks[1], (out_nc,), in_nc * 1)
    w3 = u(ks[2], (3, in_nc, out_nc), in_nc * 3)
    b3 = u(ks[3], (out_nc,), in_nc * 3)
    w5 = u(ks[4], (5, in_nc, out_nc), in_nc * 5)
    b5 = u(ks[5], (out_nc,), in_nc * 5)
    wp = u(ks[6], (3 * out_nc, out_nc), 3 * out_nc * 1)
    bp = u(ks[7], (out_nc,), 3 * out_nc * 1)
    return (w1, b1, w3, b3, w5, b5, wp, bp)


def reference(x_ncl, params):
    """Pure-JAX reference with the original (unfolded) math at high precision."""
    w1, b1, w3, b3, w5, b5, wp, bp = params
    B, in_nc, L = x_ncl.shape
    x = jnp.transpose(x_ncl, (0, 2, 1))
    xp = jnp.pad(x, ((0, 0), (2, 2), (0, 0)))
    ein = functools.partial(jnp.einsum, precision=jax.lax.Precision.HIGHEST)

    y1 = ein("blc,co->blo", xp[:, 2:2 + L], w1) + b1
    y3 = b3 + sum(ein("blc,co->blo", xp[:, 1 + t:1 + t + L], w3[t]) for t in range(3))
    y5 = b5 + sum(ein("blc,co->blo", xp[:, t:t + L], w5[t]) for t in range(5))
    ycat = jnp.concatenate([y1, y3, y5], axis=-1)
    yp = ein("blc,co->blo", ycat, wp) + bp
    return jnp.transpose(yp, (0, 2, 1))


if __name__ == "__main__":
    B, in_nc, L = 2, 4, 16
    out_nc = 100

    key = jax.random.PRNGKey(0)
    kx, kp = jax.random.split(key)
    x = jax.random.normal(kx, (B, in_nc, L), dtype=jnp.float32)
    params = init_params(kp, in_nc, out_nc)

    out = jax.block_until_ready(seq_inception_block(x, params))
    ref = jax.block_until_ready(reference(x, params))

    assert out.shape == (B, out_nc, L), out.shape
    max_err = float(jnp.max(jnp.abs(out - ref)))
    assert jnp.allclose(out, ref, atol=5e-2, rtol=5e-2), max_err
    print("KERNEL_OK")
</pallas_src>

<mosaic_0001>
module attributes {stable_mosaic.version = 11 : i64} {
  func.func @seq_inception_kernel(%arg0: i32, %arg1: i32, %arg2: memref<1x20x16xbf16, #tpu.memory_space<vmem>>, %arg3: memref<100x20xbf16, #tpu.memory_space<vmem>>, %arg4: memref<100x1xf32, #tpu.memory_space<vmem>>, %arg5: memref<1x100x16xf32, #tpu.memory_space<vmem>>) attributes {dimension_semantics = [#tpu.dimension_semantics<parallel>, #tpu.dimension_semantics<parallel>], iteration_bounds = array<i64: 2, 1>, scalar_prefetch = 0 : i64, scratch_operands = 0 : i64, tpu.core_type = #tpu.core_type<tc>, window_params = [{transform_indices = @transform_0, window_bounds = array<i64: 1, 20, 16>}, {pipeline_mode = #tpu.pipeline_mode<synchronous>, transform_indices = @transform_1, window_bounds = array<i64: 100, 20>}, {pipeline_mode = #tpu.pipeline_mode<synchronous>, transform_indices = @transform_2, window_bounds = array<i64: 100, 1>}, {transform_indices = @transform_3, window_bounds = array<i64: 1, 100, 16>}]} {
    %c0 = arith.constant 0 : index
    %c0_0 = arith.constant 0 : index
    %0 = vector.load %arg3[%c0, %c0_0] : memref<100x20xbf16, #tpu.memory_space<vmem>>, vector<100x20xbf16>
    %c0_1 = arith.constant 0 : index
    %c0_2 = arith.constant 0 : index
    %c0_3 = arith.constant 0 : index
    %1 = vector.load %arg2[%c0_1, %c0_2, %c0_3] : memref<1x20x16xbf16, #tpu.memory_space<vmem>>, vector<1x20x16xbf16>
    %2 = vector.shape_cast %1 : vector<1x20x16xbf16> to vector<20x16xbf16>
    %cst = arith.constant dense<0.000000e+00> : vector<100x16xf32>
    %3 = tpu.matmul %0, %2, %cst {dimension_numbers = #tpu.dot_dimension_numbers<[1], [0], [0], [1], [0, 0, 1, 1], [], []>} : vector<100x20xbf16>, vector<20x16xbf16>, vector<100x16xf32> -> vector<100x16xf32>
    %c0_4 = arith.constant 0 : index
    %c0_5 = arith.constant 0 : index
    %4 = vector.load %arg4[%c0_4, %c0_5] : memref<100x1xf32, #tpu.memory_space<vmem>>, vector<100x1xf32>
    %5 = vector.broadcast %4 : vector<100x1xf32> to vector<100x16xf32>
    %6 = arith.addf %3, %5 : vector<100x16xf32>
    %c0_6 = arith.constant 0 : index
    %c0_7 = arith.constant 0 : index
    %c0_8 = arith.constant 0 : index
    %7 = vector.load %arg5[%c0_6, %c0_7, %c0_8] : memref<1x100x16xf32, #tpu.memory_space<vmem>>, vector<1x100x16xf32>
    %8 = vector.shape_cast %7 : vector<1x100x16xf32> to vector<100x16xf32>
    %9 = vector.shape_cast %6 : vector<100x16xf32> to vector<1x100x16xf32>
    tpu.vector_store %arg5[%c0_6, %c0_7, %c0_8], %9 {strides = array<i32>} : memref<1x100x16xf32, #tpu.memory_space<vmem>>, vector<1x100x16xf32>,
    return
  }
  func.func @transform_0(%arg0: i32, %arg1: i32) -> (i32, i32, i32) {
    %c0_i32 = arith.constant 0 : i32
    %c0_i32_0 = arith.constant 0 : i32
    return %arg0, %c0_i32, %arg1 : i32, i32, i32
  }
  func.func @transform_1(%arg0: i32, %arg1: i32) -> (i32, i32) {
    %c0_i32 = arith.constant 0 : i32
    %c0_i32_0 = arith.constant 0 : i32
    %c0_i32_1 = arith.constant 0 : i32
    return %c0_i32, %c0_i32_0 : i32, i32
  }
  func.func @transform_2(%arg0: i32, %arg1: i32) -> (i32, i32) {
    %c0_i32 = arith.constant 0 : i32
    %c0_i32_0 = arith.constant 0 : i32
    %c0_i32_1 = arith.constant 0 : i32
    return %c0_i32, %c0_i32_0 : i32, i32
  }
  func.func @transform_3(%arg0: i32, %arg1: i32) -> (i32, i32, i32) {
    %c0_i32 = arith.constant 0 : i32
    %c0_i32_0 = arith.constant 0 : i32
    return %arg0, %c0_i32, %arg1 : i32, i32, i32
  }
}

</mosaic_0001>

<llo_original>
// kernel: seq_inception_block.1
$region0: #{seq_inception_block.1}
  #allocation0 [shape = 'u32[]', space=smem, size = 0x4, offset = 0x4, fixed_abs, tag = 'smem constant byte address 0x4 - core index']
  #allocation1 [shape = 'u32[72,128]{1,0:T(1,128)}', space=vmem, size = 0x9000, scoped, tag = 'internal scratch']
  %s0 = inlined_call_operand.vmem [shape: bf16[2,20,16], index: 0, kind: input, shape index: {}]
  %s1 = inlined_call_operand.vmem [shape: bf16[100,20], index: 1, kind: input, shape index: {}]
  %s2 = inlined_call_operand.vmem [shape: f32[100,1], index: 2, kind: input, shape index: {}]
  %s3 = inlined_call_operand.vmem [shape: f32[2,100,16], index: 3, kind: output, shape index: {}]
  %s4 = sld [smem:[#allocation0]]
  $region45: #{seq_inception_block.1} parent=0
    _
  %s6 = ssub.s32 1, %s4
  %s7 = scalar_select 0, %s6, %s4
  loop: start=0, step=1, limit=4
  $region2: #{seq_inception_block.1} parent=0 // loop_pre_header
    _
  $region3: #{seq_inception_block.1} parent=0 // loop_header
    %s9 = sphi 0, %s13
    %p10 = scmp.ge.s32.totalorder %s9, 4
    %s16 = sphi 0, %s28
    %s17 = sphi 0, %s24
    %s18 = sphi 0, %s16
    %s19 = sphi 0, %s17
    %s20 = sphi 0, %s18
    %s21 = sphi 0, %s19
    %s33 = sphi 0, %s35
    %s36 = sphi 0, %s33
    %s37 = sphi 0, %s36
    %s53 = sphi 0, %s37
    %s57 = sphi 0, %s57
    %s59 = sphi 0, %s57
    %s60 = sphi 0, %s59
    %s74 = sphi 0, %s60
    %s78 = sphi 0, %s78
    %s80 = sphi 0, %s78
    %s81 = sphi 0, %s80
    %s95 = sphi 0, %s81
    %s103 = sphi 0, %s105
    %s106 = sphi 0, %s103
    %s107 = sphi 0, %s106
    %s123 = sphi 0, %s107
  $region4: #{seq_inception_block.1} parent=0 // loop_header_branch
    %12 = sbr.rel (%p10) target = $region8
  $region5: #{seq_inception_block.1} parent=0 // loop_body
    %s14 = ssub.s32 %s9, 1
    %s15 = ssub.s32 %s9, 2
    %s22 = sadd.s32 1, %s17
    %p23 = scmp.ge.s32.totalorder %s22, 1
    %s24 = scalar_select %p23, 0, %s22
    %s25 = sadd.s32 1, %s16
    %s26 = scalar_select %p23, %s25, %s16
    %p27 = scmp.ge.s32.totalorder %s26, 2
    %s28 = scalar_select %p27, 0, %s26
    %s29 = ssub.s32 %s16, %s28
    %s30 = ssub.s32 %s17, %s24
    %s31 = sor.u32 %s29, %s30
    %p32 = scmp.eq.s32.totalorder %s31, 0
    %s34 = sadd.s32 %s33, 1
    %s35 = scalar_select %p32, %s33, %s34
    %p38 = pneg %p32
    %p39 = scmp.eq.s32.totalorder %s9, 1
    %p40 = por %p38, %p39
    %p41 = scmp.ne.s32.totalorder %s33, %s36
    %p42 = scmp.eq.s32.totalorder %s9, 0
    %p43 = por %p41, %p42
    %p44 = scmp.ne.s32.totalorder %s33, %s36
    %p45 = scmp.eq.s32.totalorder %s14, 1
    %p46 = por %p44, %p45
    %p47 = scmp.ne.s32.totalorder %s36, %s37
    %p48 = scmp.eq.s32.totalorder %s14, 0
    %p49 = por %p47, %p48
    %p50 = scmp.ne.s32.totalorder %s36, %s37
    %p51 = scmp.eq.s32.totalorder %s15, 1
    %p52 = por %p50, %p51
    %p54 = scmp.ne.s32.totalorder %s37, %s53
    %p55 = scmp.eq.s32.totalorder %s15, 0
    %p56 = por %p54, %p55
    %s58 = sadd.s32 %s57, 1
    %p61 = scmp.eq.s32.totalorder %s9, 1
    %p62 = scmp.ne.s32.totalorder %s57, %s59
    %p63 = scmp.eq.s32.totalorder %s9, 0
    %p64 = por %p62, %p63
    %p65 = scmp.ne.s32.totalorder %s57, %s59
    %p66 = scmp.eq.s32.totalorder %s14, 1
    %p67 = por %p65, %p66
    %p68 = scmp.ne.s32.totalorder %s59, %s60
    %p69 = scmp.eq.s32.totalorder %s14, 0
    %p70 = por %p68, %p69
    %p71 = scmp.ne.s32.totalorder %s59, %s60
    %p72 = scmp.eq.s32.totalorder %s15, 1
    %p73 = por %p71, %p72
    %p75 = scmp.ne.s32.totalorder %s60, %s74
    %p76 = scmp.eq.s32.totalorder %s15, 0
    %p77 = por %p75, %p76
    %s79 = sadd.s32 %s78, 1
    %p82 = scmp.eq.s32.totalorder %s9, 1
    %p83 = scmp.ne.s32.totalorder %s78, %s80
    %p84 = scmp.eq.s32.totalorder %s9, 0
    %p85 = por %p83, %p84
    %p86 = scmp.ne.s32.totalorder %s78, %s80
    %p87 = scmp.eq.s32.totalorder %s14, 1
    %p88 = por %p86, %p87
    %p89 = scmp.ne.s32.totalorder %s80, %s81
    %p90 = scmp.eq.s32.totalorder %s14, 0
    %p91 = por %p89, %p90
    %p92 = scmp.ne.s32.totalorder %s80, %s81
    %p93 = scmp.eq.s32.totalorder %s15, 1
    %p94 = por %p92, %p93
    %p96 = scmp.ne.s32.totalorder %s81, %s95
    %p97 = scmp.eq.s32.totalorder %s15, 0
    %p98 = por %p96, %p97
    %s99 = ssub.s32 %s16, %s28
    %s100 = ssub.s32 %s17, %s24
    %s101 = sor.u32 %s99, %s100
    %p102 = scmp.eq.s32.totalorder %s101, 0
    %s104 = sadd.s32 %s103, 1
    %s105 = scalar_select %p102, %s103, %s104
    %p108 = pneg %p102
    %p109 = scmp.eq.s32.totalorder %s9, 1
    %p110 = por %p108, %p109
    %p111 = scmp.ne.s32.totalorder %s103, %s106
    %p112 = scmp.eq.s32.totalorder %s9, 0
    %p113 = por %p111, %p112
    %p114 = scmp.ne.s32.totalorder %s103, %s106
    %p115 = scmp.eq.s32.totalorder %s14, 1
    %p116 = por %p114, %p115
    %p117 = scmp.ne.s32.totalorder %s106, %s107
    %p118 = scmp.eq.s32.totalorder %s14, 0
    %p119 = por %p117, %p118
    %p120 = scmp.ne.s32.totalorder %s106, %s107
    %p121 = scmp.eq.s32.totalorder %s15, 1
    %p122 = por %p120, %p121
    %p124 = scmp.ne.s32.totalorder %s107, %s123
    %p125 = scmp.eq.s32.totalorder %s15, 0
    %p126 = por %p124, %p125
    %p127 = scmp.le.s32.totalorder 1, %s9
    %p128 = scmp.lt.s32.totalorder %s9, 3
    %p129 = pnand %p127, %p128
    %p130 = pneg %p129
    // Predicated region
    $region9: #{seq_inception_block.1} parent=5 // pred_check
      _
    $region10: #{seq_inception_block.1} parent=5 // pred_check_branch
      %132 = sbr.rel (%p129) target = $region12
    $region11: #{seq_inception_block.1} parent=5 // pred_region
      %s133 = ssub.s32 %s9, 1
      // Predicated region
      $region13: #{seq_inception_block.1} parent=11 // pred_check
        %p134 = pneg %p70
      $region14: #{seq_inception_block.1} parent=11 // pred_check_branch
        %136 = sbr.rel (%p134) target = $region16
      $region15: #{seq_inception_block.1} parent=11 // pred_region
        _
      $region16: #{seq_inception_block.1} parent=11 // pred_fallthru
        _
      // Predicated region
      $region17: #{seq_inception_block.1} parent=11 // pred_check
        %p137 = pneg %p91
      $region18: #{seq_inception_block.1} parent=11 // pred_check_branch
        %139 = sbr.rel (%p137) target = $region20
      $region19: #{seq_inception_block.1} parent=11 // pred_region
        _
      $region20: #{seq_inception_block.1} parent=11 // pred_fallthru
        _
    $region12: #{seq_inception_block.1} parent=5 // pred_fallthru
      _
    %p140 = scmp.lt.s32.totalorder %s9, 2
    // Predicated region
    $region21: #{seq_inception_block.1} parent=5 // pred_check
      %p141 = pneg %p140
    $region22: #{seq_inception_block.1} parent=5 // pred_check_branch
      %143 = sbr.rel (%p141) target = $region24
    $region23: #{seq_inception_block.1} parent=5 // pred_region
      // Predicated region
      $region25: #{seq_inception_block.1} parent=23 // pred_check
        %p144 = pneg %p43
      $region26: #{seq_inception_block.1} parent=23 // pred_check_branch
        %146 = sbr.rel (%p144) target = $region28
      $region27: #{seq_inception_block.1} parent=23 // pred_region
        %p147 = scmp.lt.s32.totalorder %s16, 1
        %s148 = scalar_select %p147, %s16, 1
        %p149 = scmp.lt.s32.totalorder %s17, 0
        %s150 = scalar_select %p149, %s17, 0
        %s151 = smul.addr %s148, 3
        %s152 = sadd.s32 %s150, %s151
        %s153 = smul.addr %s152, 4
        %s154 = scalar_lea.vmem %s0, %s153
      $region28: #{seq_inception_block.1} parent=23 // pred_fallthru
        _
    $region24: #{seq_inception_block.1} parent=5 // pred_fallthru
      _
    %p155 = scmp.le.s32.totalorder 1, %s9
    %p156 = scmp.lt.s32.totalorder %s9, 3
    %p157 = pnand %p155, %p156
    %p158 = pneg %p157
    // Predicated region
    $region29: #{seq_inception_block.1} parent=5 // pred_check
      _
    $region30: #{seq_inception_block.1} parent=5 // pred_check_branch
      %160 = sbr.rel (%p157) target = $region32
    $region31: #{seq_inception_block.1} parent=5 // pred_region
      %s161 = ssub.s32 %s9, 1
      %p162 = scmp.lt.s32.totalorder %s18, 1
      %s163 = scalar_select %p162, %s18, 1
      %p164 = scmp.lt.s32.totalorder %s19, 0
      %s165 = scalar_select %p164, %s19, 0
      %s166 = smul.addr %s163, 3
      %s167 = sadd.s32 %s165, %s166
      %s168 = smul.addr %s167, 4
      %s169 = scalar_lea.vmem %s0, %s168
      %p170 = pneg %p49
      %p171 = pneg %p46
      %p172 = pneg %p70
      %p173 = pneg %p67
      %p174 = pneg %p91
      %p175 = pneg %p88
      %p176 = pneg %p119
      %p177 = pneg %p116
      %p178 = scmp.lt.s32.totalorder %s18, 1
      %s179 = scalar_select %p178, %s18, 1
      %p180 = scmp.lt.s32.totalorder %s19, 0
      %s181 = scalar_select %p180, %s19, 0
      %s182 = smul.addr %s179, 13
      %s183 = sadd.s32 %s181, %s182
      %s184 = smul.addr %s183, 8
      %s185 = scalar_lea.vmem %s3, %s184
      %p186 = scmp.lt.s32.totalorder %s18, 1
      %s187 = scalar_select %p186, %s18, 1
      %p188 = scmp.lt.s32.totalorder %s19, 0
      %s189 = scalar_select %p188, %s19, 0
      %s190 = smul.addr %s187, 3
      %s191 = sadd.s32 %s189, %s190
      %s192 = smul.addr %s191, 4
      %s193 = scalar_lea.vmem %s0, %s192
      %p194 = scmp.lt.s32.totalorder %s18, 1
      %s195 = scalar_select %p194, %s18, 1
      %p196 = scmp.lt.s32.totalorder %s19, 0
      %s197 = scalar_select %p196, %s19, 0
      %s198 = smul.addr %s195, 13
      %s199 = sadd.s32 %s197, %s198
      %s200 = smul.addr %s199, 8
      %s201 = scalar_lea.vmem %s3, %s200
      %v203 = vld [vmem:[%s1] sm:$0xf]
      %v204 = vld [vmem:[%s1 + $0x4] sm:$0xf]
      %v205 = vld [vmem:[%s1 + $0x8] sm:$0xf]
      %v206 = vld [vmem:[%s1 + $0xc] sm:$0xf]
      %v207 = vld [vmem:[%s1 + $0x10] sm:$0xf]
      %v208 = vld [vmem:[%s1 + $0x14] sm:$0xf]
      %v209 = vld [vmem:[%s1 + $0x18] sm:$0xf]
      %v210 = vld [vmem:[%s1 + $0x1c] sm:$0xf]
      %v211 = vld [vmem:[%s1 + $0x20] sm:$0xf]
      %v212 = vld [vmem:[%s1 + $0x24] sm:$0xf]
      %v213 = vld [vmem:[%s1 + $0x28] sm:$0xf]
      %v214 = vld [vmem:[%s1 + $0x2c] sm:$0xf]
      %v215 = vld [vmem:[%s1 + $0x30] sm:$0x3]
      %v216 = vld [vmem:[%s193] sm:$0xf]
      %v217 = vld [vmem:[%s193 + $0x4] sm:$0xf]
      %v218 = vld [vmem:[%s193 + $0x8] sm:$0x3]
      %v219 = vld [vmem:[%s2] sm:$0xff]
      %v220 = vld [vmem:[%s2 + $0x8] sm:$0xff]
      %v221 = vld [vmem:[%s2 + $0x10] sm:$0xff]
      %v222 = vld [vmem:[%s2 + $0x18] sm:$0xff]
      %v223 = vld [vmem:[%s2 + $0x20] sm:$0xff]
      %v224 = vld [vmem:[%s2 + $0x28] sm:$0xff]
      %v225 = vld [vmem:[%s2 + $0x30] sm:$0xff]
      %v226 = vld [vmem:[%s2 + $0x38] sm:$0xff]
      %v227 = vld [vmem:[%s2 + $0x40] sm:$0xff]
      %v228 = vld [vmem:[%s2 + $0x48] sm:$0xff]
      %v229 = vld [vmem:[%s2 + $0x50] sm:$0xff]
      %v230 = vld [vmem:[%s2 + $0x58] sm:$0xff]
      %v231 = vld [vmem:[%s2 + $0x60] sm:$0xf]
      %233 = vset.pattern.permute.xlu0 0
      %234 = vperm.xlu0 %233, %v219
      %v235 = vpop.permute.xlu0 %234
      %238 = vset.pattern.permute.xlu0 0
      %239 = vperm.xlu0 %238, %v220
      %v240 = vpop.permute.xlu0 %239
      %243 = vset.pattern.permute.xlu0 0
      %244 = vperm.xlu0 %243, %v221
      %v245 = vpop.permute.xlu0 %244
      %248 = vset.pattern.permute.xlu0 0
      %249 = vperm.xlu0 %248, %v222
      %v250 = vpop.permute.xlu0 %249
      %253 = vset.pattern.permute.xlu0 0
      %254 = vperm.xlu0 %253, %v223
      %v255 = vpop.permute.xlu0 %254
      %258 = vset.pattern.permute.xlu0 0
      %259 = vperm.xlu0 %258, %v224
      %v260 = vpop.permute.xlu0 %259
      %263 = vset.pattern.permute.xlu0 0
      %264 = vperm.xlu0 %263, %v225
      %v265 = vpop.permute.xlu0 %264
      %268 = vset.pattern.permute.xlu0 0
      %269 = vperm.xlu0 %268, %v226
      %v270 = vpop.permute.xlu0 %269
      %273 = vset.pattern.permute.xlu0 0
      %274 = vperm.xlu0 %273, %v227
      %v275 = vpop.permute.xlu0 %274
      %278 = vset.pattern.permute.xlu0 0
      %279 = vperm.xlu0 %278, %v228
      %v280 = vpop.permute.xlu0 %279
      %283 = vset.pattern.permute.xlu0 0
      %284 = vperm.xlu0 %283, %v229
      %v285 = vpop.permute.xlu0 %284
      %288 = vset.pattern.permute.xlu0 0
      %289 = vperm.xlu0 %288, %v230
      %v290 = vpop.permute.xlu0 %289
      %293 = vset.pattern.permute.xlu0 0
      %294 = vperm.xlu0 %293, %v231
      %v295 = vpop.permute.xlu0 %294
      %v310 = vunpack.c.l.b16 %v203
      %v311 = vunpack.c.l.b16 %v204
      %v312 = vunpack.c.l.b16 %v205
      %v313 = vunpack.c.l.b16 %v206
      %v314 = vunpack.c.l.b16 %v207
      %v315 = vunpack.c.l.b16 %v208
      %v316 = vunpack.c.l.b16 %v209
      %v317 = vunpack.c.l.b16 %v210
      %v318 = vunpack.c.l.b16 %v211
      %v319 = vunpack.c.l.b16 %v212
      %v320 = vunpack.c.l.b16 %v213
      %v321 = vunpack.c.l.b16 %v214
      %v322 = vunpack.c.l.b16 %v215
      %v323 = vpack.c.b16 %v311, %v310
      %v324 = vpack.c.b16 %v313, %v312
      %v325 = vpack.c.b16 %v315, %v314
      %v326 = vpack.c.b16 %v317, %v316
      %v327 = vpack.c.b16 %v319, %v318
      %v328 = vpack.c.b16 %v321, %v320
      %v329 = vpack.c.b16 %v322, %v322
      %v333 = vunpack.c.l.b16 %v216
      %v334 = vunpack.c.l.b16 %v217
      %v335 = vunpack.c.l.b16 %v218
      %v336 = vpack.c.b16 %v334, %v333
      %v337 = vpack.c.b16 %v335, %v335
      %vm339 = vcmask 162816
      %v341 = vsel %vm339, %v323, 0
      %v344 = vsel %vm339, %v324, 0
      %v347 = vsel %vm339, %v325, 0
      %v350 = vsel %vm339, %v326, 0
      %v353 = vsel %vm339, %v327, 0
      %v356 = vsel %vm339, %v328, 0
      %v359 = vsel %vm339, %v329, 0
      %vm361 = vcmask 1041408
      %v363 = vsel %vm361, %v337, 0
      %365 = vmatpush.bf16.msra.mxu0 0
      %366 = vmatpush.bf16.msra.mxu0 0
      %367 = vmatpush.bf16.msra.mxu0 0
      %368 = vmatpush.bf16.msra.mxu0 0
      %369 = vmatpush.bf16.msra.mxu0 0
      %370 = vmatpush.bf16.msra.mxu0 0
      %371 = vmatpush.bf16.msra.mxu0 %v363
      %372 = vmatpush.bf16.msra.mxu0 %v336
      %373 = vmatmul.bf16.gmra.mxu0 %v341
      %v374 = vpop.f32.mrf.mxu0
      %v375 = vadd.f32 %v235, %v374
      %v376 = vpop.f32.mrf.mxu0
      %v377 = vadd.f32 %v240, %v376
      %378 = vmatmul.bf16.gmra.mxu0 %v344
      %v379 = vpop.f32.mrf.mxu0
      %v380 = vadd.f32 %v245, %v379
      %v381 = vpop.f32.mrf.mxu0
      %v382 = vadd.f32 %v250, %v381
      %383 = vmatmul.bf16.gmra.mxu0 %v347
      %v384 = vpop.f32.mrf.mxu0
      %v385 = vadd.f32 %v255, %v384
      %v386 = vpop.f32.mrf.mxu0
      %v387 = vadd.f32 %v260, %v386
      %388 = vmatmul.bf16.gmra.mxu0 %v350
      %v389 = vpop.f32.mrf.mxu0
      %v390 = vadd.f32 %v265, %v389
      %v391 = vpop.f32.mrf.mxu0
      %v392 = vadd.f32 %v270, %v391
      %393 = vmatmul.bf16.gmra.mxu0 %v353
      %v394 = vpop.f32.mrf.mxu0
      %v395 = vadd.f32 %v275, %v394
      %v396 = vpop.f32.mrf.mxu0
      %v397 = vadd.f32 %v280, %v396
      %398 = vmatmul.bf16.gmra.mxu0 %v356
      %v399 = vpop.f32.mrf.mxu0
      %v400 = vadd.f32 %v285, %v399
      %v401 = vpop.f32.mrf.mxu0
      %v402 = vadd.f32 %v290, %v401
      %403 = vmatmul.bf16.gmra.mxu0 %v359
      %v404 = vpop.f32.mrf.mxu0
      %v405 = vadd.f32 %v295, %v404
      %v406 = vpop.f32.mrf.mxu0
      %407 = vdwg.mxu0
      %vm408 = vcmask 130048
      %409 = vst.msk [vmem:[%s201] sm:$0xff] %vm408, %v375
      %410 = vst.msk [vmem:[%s201 + $0x8] sm:$0xff] %vm408, %v377
      %411 = vst.msk [vmem:[%s201 + $0x10] sm:$0xff] %vm408, %v380
      %412 = vst.msk [vmem:[%s201 + $0x18] sm:$0xff] %vm408, %v382
      %413 = vst.msk [vmem:[%s201 + $0x20] sm:$0xff] %vm408, %v385
      %414 = vst.msk [vmem:[%s201 + $0x28] sm:$0xff] %vm408, %v387
      %415 = vst.msk [vmem:[%s201 + $0x30] sm:$0xff] %vm408, %v390
      %416 = vst.msk [vmem:[%s201 + $0x38] sm:$0xff] %vm408, %v392
      %417 = vst.msk [vmem:[%s201 + $0x40] sm:$0xff] %vm408, %v395
      %418 = vst.msk [vmem:[%s201 + $0x48] sm:$0xff] %vm408, %v397
      %419 = vst.msk [vmem:[%s201 + $0x50] sm:$0xff] %vm408, %v400
      %420 = vst.msk [vmem:[%s201 + $0x58] sm:$0xff] %vm408, %v402
      %vm421 = vcmask 125952
      %422 = vst.msk [vmem:[%s201 + $0x60] sm:$0xf] %vm421, %v405
      %p423 = scmp.lt.s32.totalorder %s18, 1
      %s424 = scalar_select %p423, %s18, 1
      %p425 = scmp.lt.s32.totalorder %s19, 0
      %s426 = scalar_select %p425, %s19, 0
      %s427 = smul.addr %s424, 13
      %s428 = sadd.s32 %s426, %s427
      %s429 = smul.addr %s428, 8
      %s430 = scalar_lea.vmem %s3, %s429
      // Predicated region
      $region33: #{seq_inception_block.1} parent=31 // pred_check
        %p431 = pneg %p116
      $region34: #{seq_inception_block.1} parent=31 // pred_check_branch
        %433 = sbr.rel (%p431) target = $region36
      $region35: #{seq_inception_block.1} parent=31 // pred_region
        _
      $region36: #{seq_inception_block.1} parent=31 // pred_fallthru
        _
    $region32: #{seq_inception_block.1} parent=5 // pred_fallthru
      _
    %p434 = scmp.le.s32.totalorder 2, %s9
    // Predicated region
    $region37: #{seq_inception_block.1} parent=5 // pred_check
      %p435 = pneg %p434
    $region38: #{seq_inception_block.1} parent=5 // pred_check_branch
      %437 = sbr.rel (%p435) target = $region40
    $region39: #{seq_inception_block.1} parent=5 // pred_region
      %s438 = ssub.s32 %s9, 2
      // Predicated region
      $region41: #{seq_inception_block.1} parent=39 // pred_check
        %p439 = pneg %p122
      $region42: #{seq_inception_block.1} parent=39 // pred_check_branch
        %441 = sbr.rel (%p439) target = $region44
      $region43: #{seq_inception_block.1} parent=39 // pred_region
        %p442 = scmp.lt.s32.totalorder %s20, 1
        %s443 = scalar_select %p442, %s20, 1
        %p444 = scmp.lt.s32.totalorder %s21, 0
        %s445 = scalar_select %p444, %s21, 0
        %s446 = smul.addr %s443, 13
        %s447 = sadd.s32 %s445, %s446
        %s448 = smul.addr %s447, 8
        %s449 = scalar_lea.vmem %s3, %s448
      $region44: #{seq_inception_block.1} parent=39 // pred_fallthru
        _
    $region40: #{seq_inception_block.1} parent=5 // pred_fallthru
      _
  $region6: #{seq_inception_block.1} parent=0 // loop_footer
    %s13 = sadd.s32 1, %s9
  $region7: #{seq_inception_block.1} parent=0 // loop_footer_branch
    %8 = sbr.rel target = $region3
  $region8: #{seq_inception_block.1} parent=0 // loop_exit
    _

</llo_original>
